<compile_context>
chip_gen: v7x
topology: tpu7x:2x2x1
jax: 0.10.0
libtpu: 0.0.40
codegen_flags: <defaults>
</compile_context>

<pallas_src>
import jax
import jax.numpy as jnp
from jax.experimental import pallas as pl
from jax.experimental.pallas import tpu as pltpu  # noqa: F401  (TPU backend)


# ----------------------------------------------------------------------------
# "Config" mirroring the PyTorch module (small synthetic sizes).
# ----------------------------------------------------------------------------
class Config:
    num_labels = 2
    dim_alpaca = 8
    dim_cfc = 8
    dim_ensemble = 8
    dropout_value = 0.1


def init_params(key):
    """Mirror the parameter shapes the PyTorch __init__ creates.  None of these
    are used by CredibilityClassifierRandom.forward, so they never enter the
    kernel — they exist only so the module surface matches the reference."""
    keys = jax.random.split(key, 6)

    def lin(k, out_f, in_f):
        return (jax.random.normal(k, (out_f, in_f), jnp.float32) * 0.02,
                jnp.zeros((out_f,), jnp.float32))

    return {
        "alpaca_classifier":     lin(keys[0], Config.num_labels, 256),
        "alpaca_intermediate":   lin(keys[1], 256, Config.dim_alpaca),
        "cfc_classifier":        lin(keys[2], Config.num_labels, 1024),
        "cfc_intermediate":      lin(keys[3], 1024, Config.dim_cfc + 1),
        "ensemble_classifier":   lin(keys[4], Config.num_labels, 48),
        "ensemble_intermediate": lin(keys[5], 48, Config.dim_ensemble),
        # LSTM(input=dim_ensemble, hidden=128, proj=num_labels) shapes:
        "ensemble_lstm": {
            "w_ih": jnp.zeros((4 * 128, Config.dim_ensemble), jnp.float32),
            "w_hh": jnp.zeros((4 * 128, Config.num_labels), jnp.float32),
            "b_ih": jnp.zeros((4 * 128,), jnp.float32),
            "b_hh": jnp.zeros((4 * 128,), jnp.float32),
            "w_hr": jnp.zeros((Config.num_labels, 128), jnp.float32),
        },
    }


# ----------------------------------------------------------------------------
# Pallas kernel: build one-hot logits from a per-row random class index.
# ----------------------------------------------------------------------------
def _random_onehot_kernel(choice_ref, logits_ref):
    # choice_ref: (B, 1) int32 in VMEM — per-row random index in {0, 1}.
    # logits_ref: (B, L) float32 output — one-hot rows.
    B, L = logits_ref.shape
    col = jax.lax.broadcasted_iota(jnp.int32, (B, L), 1)
    logits_ref[...] = (col == choice_ref[...]).astype(logits_ref.dtype)


def credibility_classifier_random_forward(input_ids, token_type_ids,
                                          attention_mask, labels, *, key):
    """Equivalent of CredibilityClassifierRandom.forward:
       returns (random one-hot logits with labels.shape, labels)."""
    del input_ids, token_type_ids, attention_mask  # unused by this classifier
    B, L = labels.shape

    # Mirrors `random.choice([0, 1])` drawn once per row (hardcoded {0, 1} in
    # the reference, independent of num_labels).
    # TODO(synk): Python's stateful global-RNG stream cannot be reproduced
    # bitwise; a fresh jax.random key per call gives equivalent semantics.
    choice = jax.random.randint(key, (B, 1), 0, 2, dtype=jnp.int32)

    logits = pl.pallas_call(
        _random_onehot_kernel,
        out_shape=jax.ShapeDtypeStruct((B, L), jnp.float32),  # torch.zeros default dtype
        in_specs=[pl.BlockSpec((B, 1), lambda: (0, 0))],      # full-array block
        out_specs=pl.BlockSpec((B, L), lambda: (0, 0)),       # full-array block
    )(choice)

    # labels are returned as-is from the wrapper: no kernel pass-through DMA.
    return logits, labels


if __name__ == "__main__":
    key = jax.random.PRNGKey(0)
    k_params, k_ids, k_labels, k_choice = jax.random.split(key, 4)

    # Parameters exist only to mirror the module's __init__ (unused in forward).
    _params = init_params(k_params)

    batch, seq = 2, 8
    input_ids = jax.random.randint(k_ids, (batch, seq), 0, 1000, dtype=jnp.int32)
    token_type_ids = jnp.zeros((batch, seq), jnp.int32)
    attention_mask = jnp.ones((batch, seq), jnp.int32)
    # labels: (batch, num_labels) one-hot targets
    lbl_idx = jax.random.randint(k_labels, (batch,), 0, Config.num_labels)
    labels = jax.nn.one_hot(lbl_idx, Config.num_labels, dtype=jnp.float32)

    logits, labels_out = credibility_classifier_random_forward(
        input_ids, token_type_ids, attention_mask, labels, key=k_choice)
    jax.block_until_ready((logits, labels_out))

    # Sanity: logits rows are one-hot {0,1}, labels unchanged (same array).
    assert logits.shape == labels.shape
    assert bool(jnp.all(jnp.sum(logits, axis=1) == 1.0))
    assert bool(jnp.all((logits == 0.0) | (logits == 1.0)))
    assert bool(jnp.all(labels_out == labels))
    print("KERNEL_OK")
</pallas_src>

<mosaic_0001>
module attributes {stable_mosaic.version = 11 : i64} {
  func.func @_random_onehot_kernel(%arg0: memref<2x1xi32, #tpu.memory_space<vmem>>, %arg1: memref<2x2xf32, #tpu.memory_space<vmem>>) attributes {dimension_semantics = [], scalar_prefetch = 0 : i64, scratch_operands = 0 : i64, tpu.core_type = #tpu.core_type<tc>} {
    %0 = tpu.iota {dimensions = array<i32: 1>} : vector<2x2xi32>
    %c0 = arith.constant 0 : index
    %c0_0 = arith.constant 0 : index
    %1 = vector.load %arg0[%c0, %c0_0] : memref<2x1xi32, #tpu.memory_space<vmem>>, vector<2x1xi32>
    %2 = vector.broadcast %1 : vector<2x1xi32> to vector<2x2xi32>
    %3 = arith.cmpi eq, %0, %2 : vector<2x2xi32>
    %4 = arith.extui %3 : vector<2x2xi1> to vector<2x2xi32>
    %5 = arith.sitofp %4 : vector<2x2xi32> to vector<2x2xf32>
    %c0_1 = arith.constant 0 : index
    %c0_2 = arith.constant 0 : index
    %6 = vector.load %arg1[%c0_1, %c0_2] : memref<2x2xf32, #tpu.memory_space<vmem>>, vector<2x2xf32>
    tpu.vector_store %arg1[%c0_1, %c0_2], %5 {strides = array<i32>} : memref<2x2xf32, #tpu.memory_space<vmem>>, vector<2x2xf32>,
    return
  }
}

</mosaic_0001>

<llo_original>
// kernel: tpu_custom_call.1
$region0: #{tpu_custom_call.1}
  #allocation0 [shape = 'u32[]', space=smem, size = 0x4, offset = 0x4, fixed_abs, tag = 'smem constant byte address 0x4 - core index']
  #allocation1 [shape = 'u32[144,128]{1,0:T(1,128)}', space=vmem, size = 0x12000, scoped, tag = 'internal scratch']
  %s0 = inlined_call_operand.vmem [shape: s32[2,1], index: 0, kind: input, shape index: {}]
  %s1 = inlined_call_operand.hbm [shape: f32[2,2], index: 1, kind: output, shape index: {}]
  %s2 = sld [smem:[#allocation0]]
  $region14: #{tpu_custom_call.1} parent=0
    _
  %s4 = ssub.s32 1, %s2
  %s5 = scalar_select 0, %s4, %s2
  $region1: #{tpu_custom_call.1} parent=0
    #allocation2 [shape = 'u8[1024]{0}', space=vmem, size = 0x400, scoped, tag = 'output window, operand 0, single buffered']
    #allocation3 [shape = 's32[1]{0}', space=sflag, size = 0x4, scoped, tag = 'scoped memory for tpu_custom_call.1']
    %6 = vsyncpa [#allocation3], 0
    // Predicated region
    $region2: #{tpu_custom_call.1} parent=1 // pred_check
      _
    $region3: #{tpu_custom_call.1} parent=1 // pred_check_branch
      %8 = sbr.rel (0) target = $region5
    $region4: #{tpu_custom_call.1} parent=1 // pred_region
      _
    $region5: #{tpu_custom_call.1} parent=1 // pred_fallthru
      _
    %v9 = vlaneseq
    %v10 = vand.u32 %v9, 127
    %v11 = vld [vmem:[%s0] sm:$0x3]
    %12 = vset.pattern.permute.xlu0 0
    %13 = vperm.xlu0 %12, %v11
    %v14 = vpop.permute.xlu0 %13
    %vm15 = vcmp.eq.s32.totalorder %v10, %v14
    %v16 = vsel %vm15, 1, 0
    %v17 = vcvt.s32.f32 %v16
    %vm18 = vcmask 9216
    %19 = vst.msk [vmem:[#allocation2] sm:$0x3] %vm18, %v17
    // Predicated region
    $region6: #{tpu_custom_call.1} parent=1 // pred_check
      _
    $region7: #{tpu_custom_call.1} parent=1 // pred_check_branch
      %21 = sbr.rel (0) target = $region9
    $region8: #{tpu_custom_call.1} parent=1 // pred_region
      %s23 = ssub.s32 32, 32
      %24 = vsyncadd [#allocation3], %s23
      %s26 = sshll.u32 [#allocation2], 4
      %s27 = int_to_ptr.vmem [resolvable:$true] %s26
      %29 = dma.vmem_to_hbm [thread:$0]  %s27, 32, %s1, [#allocation3]
    $region9: #{tpu_custom_call.1} parent=1 // pred_fallthru
      _
    // Predicated region
    $region10: #{tpu_custom_call.1} parent=1 // pred_check
      _
    $region11: #{tpu_custom_call.1} parent=1 // pred_check_branch
      %31 = sbr.rel (0) target = $region13
    $region12: #{tpu_custom_call.1} parent=1 // pred_region
      %32 = dma.done [#allocation3], 32
    $region13: #{tpu_custom_call.1} parent=1 // pred_fallthru
      _
    %33 = vsyncpa [#allocation3], 1

</llo_original>
